<compile_context>
chip_gen: v7x
topology: tpu7x:2x2x1
jax: 0.10.0
libtpu: 0.0.40
codegen_flags: <defaults>
</compile_context>

<pallas_src>
import jax
import jax.numpy as jnp
from jax.experimental import pallas as pl
from jax.experimental.pallas import tpu as pltpu


# ---------------------------------------------------------------------------
# Kernel
# ---------------------------------------------------------------------------
def _linear11_kernel(params_ref, x_ref, o_ref):
    # params_ref: SMEM (2,)  -> [w, b]
    # x_ref / o_ref: VMEM (tile_rows, LANE) blocks
    w = params_ref[0]
    b = params_ref[1]
    # Linear(1, 1) degenerates to a fused scale + shift (no MXU needed).
    o_ref[...] = x_ref[...] * w + b


# ---------------------------------------------------------------------------
# Wrapper
# ---------------------------------------------------------------------------
LANE = 512              # lane-dense last dim (multiple of 128)
MAX_TILE_ROWS = 1024    # 1024 * 512 * 4B = 2 MiB per f32 buffer
_PALLAS_MIN_ELEMENTS = 65536  # below this, kernel-launch overhead dominates


def _round_up(x, m):
    return ((x + m - 1) // m) * m


def _linear11_pallas(x, w, b):
    n = x.shape[0]
    dtype = x.dtype

    # Lane-dense repack: (N, 1) -> flat -> (rows_padded, LANE).
    flat = x.reshape(-1)
    rows = pl.cdiv(n, LANE)
    tile_rows = min(MAX_TILE_ROWS, _round_up(rows, 8))   # (8, 128)-aligned
    rows_padded = _round_up(rows, tile_rows)
    padded = rows_padded * LANE
    if padded != n:
        flat = jnp.pad(flat, (0, padded - n))
    x2d = flat.reshape(rows_padded, LANE)

    params = jnp.concatenate([w.reshape(-1), b.reshape(-1)]).astype(dtype)  # (2,)

    grid = (rows_padded // tile_rows,)
    y2d = pl.pallas_call(
        _linear11_kernel,
        out_shape=jax.ShapeDtypeStruct((rows_padded, LANE), dtype),
        grid=grid,
        in_specs=[
            pl.BlockSpec(memory_space=pltpu.SMEM),             # params [w, b]
            pl.BlockSpec((tile_rows, LANE), lambda i: (i, 0)),  # x tile (VMEM)
        ],
        out_specs=pl.BlockSpec((tile_rows, LANE), lambda i: (i, 0)),
        compiler_params=pltpu.CompilerParams(
            dimension_semantics=("parallel",),  # dual-TC sharding on v7x
        ),
    )(params, x2d)

    # Drop padding, restore (N, 1).
    return y2d.reshape(-1)[:n].reshape(n, 1)


def linear11(x, w, b, use_pallas=None):
    """y = x @ w.T + b for w: (1,1), b: (1,), x: (N, 1)."""
    n, f = x.shape
    assert f == 1 and w.shape == (1, 1) and b.shape == (1,)
    if use_pallas is None:
        use_pallas = n * f >= _PALLAS_MIN_ELEMENTS
    if not use_pallas:
        # Tiny batch: a pure-JAX fused multiply-add beats any kernel launch.
        return x * w[0, 0] + b[0]
    return _linear11_pallas(x, w, b)


# ---------------------------------------------------------------------------
# Demo / correctness check
# ---------------------------------------------------------------------------
if __name__ == "__main__":
    key = jax.random.PRNGKey(0)
    kw, kb = jax.random.split(key, 2)

    # Input consistent with the original script: x = np.linspace(0, 1, 1000)
    # fed as a column of scalars, shape [1000, 1].
    x = jnp.linspace(0.0, 1.0, 1000, dtype=jnp.float32).reshape(-1, 1)

    # Deterministic parameter init (PyTorch Linear(1,1) default is U(-1, 1)).
    w = jax.random.uniform(kw, (1, 1), dtype=jnp.float32, minval=-1.0, maxval=1.0)
    b = jax.random.uniform(kb, (1,), dtype=jnp.float32, minval=-1.0, maxval=1.0)

    y_ref = x @ w.T + b

    # Exercise the Pallas path explicitly (forced; auto-dispatch would use the
    # fused pure-JAX path at this small N).
    y_pallas = jax.block_until_ready(linear11(x, w, b, use_pallas=True))
    assert y_pallas.shape == (1000, 1)
    assert jnp.allclose(y_pallas, y_ref, atol=1e-6)

    # Also check the small-N auto-dispatch (pure-JAX fused) path.
    y_auto = jax.block_until_ready(linear11(x, w, b))
    assert jnp.allclose(y_auto, y_ref, atol=1e-6)

    print("KERNEL_OK")
</pallas_src>

<mosaic_0001>
module attributes {stable_mosaic.version = 11 : i64} {
  func.func @_linear11_kernel(%arg0: i32, %arg1: memref<2xf32, #tpu.memory_space<smem>>, %arg2: memref<8x512xf32, #tpu.memory_space<vmem>>, %arg3: memref<8x512xf32, #tpu.memory_space<vmem>>) attributes {dimension_semantics = [#tpu.dimension_semantics<parallel>], iteration_bounds = array<i64: 1>, scalar_prefetch = 0 : i64, scratch_operands = 0 : i64, tpu.core_type = #tpu.core_type<tc>, window_params = [{transform_indices = @transform_0, window_bounds = array<i64: 2>}, {transform_indices = @transform_1, window_bounds = array<i64: 8, 512>}, {transform_indices = @transform_2, window_bounds = array<i64: 8, 512>}]} {
    %c0 = arith.constant 0 : index
    %0 = memref.load %arg1[%c0] : memref<2xf32, #tpu.memory_space<smem>>
    %c1 = arith.constant 1 : index
    %1 = memref.load %arg1[%c1] : memref<2xf32, #tpu.memory_space<smem>>
    %c0_0 = arith.constant 0 : index
    %c0_1 = arith.constant 0 : index
    %2 = vector.load %arg2[%c0_0, %c0_1] : memref<8x512xf32, #tpu.memory_space<vmem>>, vector<8x512xf32>
    %3 = vector.broadcast %0 : f32 to vector<8x512xf32>
    %4 = arith.mulf %2, %3 : vector<8x512xf32>
    %5 = vector.broadcast %1 : f32 to vector<8x512xf32>
    %6 = arith.addf %4, %5 : vector<8x512xf32>
    %c0_2 = arith.constant 0 : index
    %c0_3 = arith.constant 0 : index
    %7 = vector.load %arg3[%c0_2, %c0_3] : memref<8x512xf32, #tpu.memory_space<vmem>>, vector<8x512xf32>
    tpu.vector_store %arg3[%c0_2, %c0_3], %6 {strides = array<i32>} : memref<8x512xf32, #tpu.memory_space<vmem>>, vector<8x512xf32>,
    return
  }
  func.func @transform_0(%arg0: i32) -> i32 {
    %c0_i32 = arith.constant 0 : i32
    %c0_i32_0 = arith.constant 0 : i32
    return %c0_i32 : i32
  }
  func.func @transform_1(%arg0: i32) -> (i32, i32) {
    %c0_i32 = arith.constant 0 : i32
    %c0_i32_0 = arith.constant 0 : i32
    return %arg0, %c0_i32 : i32, i32
  }
  func.func @transform_2(%arg0: i32) -> (i32, i32) {
    %c0_i32 = arith.constant 0 : i32
    %c0_i32_0 = arith.constant 0 : i32
    return %arg0, %c0_i32 : i32, i32
  }
}

</mosaic_0001>

<llo_original>
// kernel: tpu_custom_call.1
$region0: #{tpu_custom_call.1}
  #allocation0 [shape = 'u32[]', space=smem, size = 0x4, offset = 0x4, fixed_abs, tag = 'smem constant byte address 0x4 - core index']
  #allocation1 [shape = 'u32[144,128]{1,0:T(1,128)}', space=vmem, size = 0x12000, scoped, tag = 'internal scratch']
  %s0 = inlined_call_operand.hbm [shape: f32[2], index: 0, kind: input, shape index: {}]
  %s1 = inlined_call_operand.hbm [shape: f32[8,512], index: 1, kind: input, shape index: {}]
  %s2 = inlined_call_operand.hbm [shape: f32[8,512], index: 2, kind: output, shape index: {}]
  %s3 = sld [smem:[#allocation0]]
  $region26: #{tpu_custom_call.1} parent=0
    _
  %s5 = ssub.s32 1, %s3
  %s6 = scalar_select 0, %s5, %s3
  $region1: #{tpu_custom_call.1} parent=0
    #allocation2 [shape = 'u8[512]{0}', space=smem, size = 0x200, scoped, tag = 'input window, operand 0, single buffered']
    #allocation3 [shape = 's32[1]{0}', space=sflag, size = 0x4, scoped, tag = 'scoped memory for tpu_custom_call.1']
    #allocation4 [shape = 's32[1]{0}', space=sflag, size = 0x4, scoped, tag = 'scoped memory for tpu_custom_call.1']
    #allocation5 [shape = 's32[1]{0}', space=sflag, size = 0x4, scoped, tag = 'scoped memory for tpu_custom_call.1']
    #allocation6 [shape = 'u8[16384]{0}', space=vmem, size = 0x4000, scoped, tag = 'input window, operand 1, single buffered']
    #allocation7 [shape = 'u8[16384]{0}', space=vmem, size = 0x4000, scoped, tag = 'output window, operand 0, single buffered']
    %7 = vsyncpa [#allocation5], 0
    %8 = vsyncpa [#allocation3], 0
    %9 = vsyncpa [#allocation4], 0
    // Predicated region
    $region2: #{tpu_custom_call.1} parent=1 // pred_check
      _
    $region3: #{tpu_custom_call.1} parent=1 // pred_check_branch
      %11 = sbr.rel (0) target = $region5
    $region4: #{tpu_custom_call.1} parent=1 // pred_region
      %s13 = ssub.s32 16, 16
      %14 = vsyncadd [#allocation5], %s13
      %17 = dma.hbm_to_smem %s0, 16, [#allocation2], [#allocation5]
    $region5: #{tpu_custom_call.1} parent=1 // pred_fallthru
      _
    // Predicated region
    $region6: #{tpu_custom_call.1} parent=1 // pred_check
      _
    $region7: #{tpu_custom_call.1} parent=1 // pred_check_branch
      %19 = sbr.rel (0) target = $region9
    $region8: #{tpu_custom_call.1} parent=1 // pred_region
      %s21 = ssub.s32 512, 512
      %22 = vsyncadd [#allocation3], %s21
      %s24 = sshll.u32 [#allocation6], 4
      %s25 = int_to_ptr.vmem [resolvable:$true] %s24
      %27 = dma.hbm_to_vmem [thread:$0]  %s1, 512, %s25, [#allocation3]
    $region9: #{tpu_custom_call.1} parent=1 // pred_fallthru
      _
    // Predicated region
    $region10: #{tpu_custom_call.1} parent=1 // pred_check
      _
    $region11: #{tpu_custom_call.1} parent=1 // pred_check_branch
      %29 = sbr.rel (0) target = $region13
    $region12: #{tpu_custom_call.1} parent=1 // pred_region
      %30 = dma.done [#allocation5], 16
    $region13: #{tpu_custom_call.1} parent=1 // pred_fallthru
      _
    // Predicated region
    $region14: #{tpu_custom_call.1} parent=1 // pred_check
      _
    $region15: #{tpu_custom_call.1} parent=1 // pred_check_branch
      %32 = sbr.rel (0) target = $region17
    $region16: #{tpu_custom_call.1} parent=1 // pred_region
      %33 = dma.done [#allocation3], 512
    $region17: #{tpu_custom_call.1} parent=1 // pred_fallthru
      _
    %34 = sfence
    %s35 = sld [smem:[#allocation2]]
    %s36 = sld [smem:[#allocation2 + $0x1]]
    %v37 = vld [vmem:[#allocation6] sm:$0xff]
    %v38 = vld [vmem:[#allocation6 + $0x8] sm:$0xff]
    %v39 = vld [vmem:[#allocation6 + $0x10] sm:$0xff]
    %v40 = vld [vmem:[#allocation6 + $0x18] sm:$0xff]
    %v41 = vstv %s35
    %v42 = vmul.f32 %v37, %v41
    %v43 = vmul.f32 %v38, %v41
    %v44 = vmul.f32 %v39, %v41
    %v45 = vmul.f32 %v40, %v41
    %v46 = vstv %s36
    %v47 = vadd.f32 %v42, %v46
    %v48 = vadd.f32 %v43, %v46
    %v49 = vadd.f32 %v44, %v46
    %v50 = vadd.f32 %v45, %v46
    %51 = vst [vmem:[#allocation7] sm:$0xff] %v47
    %52 = vst [vmem:[#allocation7 + $0x8] sm:$0xff] %v48
    %53 = vst [vmem:[#allocation7 + $0x10] sm:$0xff] %v49
    %54 = vst [vmem:[#allocation7 + $0x18] sm:$0xff] %v50
    // Predicated region
    $region18: #{tpu_custom_call.1} parent=1 // pred_check
      _
    $region19: #{tpu_custom_call.1} parent=1 // pred_check_branch
      %56 = sbr.rel (0) target = $region21
    $region20: #{tpu_custom_call.1} parent=1 // pred_region
      %s58 = ssub.s32 512, 512
      %59 = vsyncadd [#allocation4], %s58
      %s61 = sshll.u32 [#allocation7], 4
      %s62 = int_to_ptr.vmem [resolvable:$true] %s61
      %64 = dma.vmem_to_hbm [thread:$0]  %s62, 512, %s2, [#allocation4]
    $region21: #{tpu_custom_call.1} parent=1 // pred_fallthru
      _
    // Predicated region
    $region22: #{tpu_custom_call.1} parent=1 // pred_check
      _
    $region23: #{tpu_custom_call.1} parent=1 // pred_check_branch
      %66 = sbr.rel (0) target = $region25
    $region24: #{tpu_custom_call.1} parent=1 // pred_region
      %67 = dma.done [#allocation4], 512
    $region25: #{tpu_custom_call.1} parent=1 // pred_fallthru
      _
    %68 = vsyncpa [#allocation3], 1
    %69 = vsyncpa [#allocation4], 1
    %70 = vsyncpa [#allocation5], 1

</llo_original>
